<compile_context>
chip_gen: v5e
topology: v5e:2x2
jax: 0.10.0
libtpu: 0.0.40
codegen_flags: <defaults>
</compile_context>

<pallas_src>
from functools import partial

import jax
import jax.numpy as jnp
from jax.experimental import pallas as pl
from jax.experimental.pallas import tpu as pltpu


def _round_up(x, m):
    return -(-x // m) * m


def conv_pool_kernel(x_ref, w_ref, b_ref, o_ref, acc_ref, *,
                     inv_hw, hw, hw_tile, needs_mask):
    # x_ref:   (TB, hw_tile) VMEM, native dtype -- lane-dense flattened spatial
    # w_ref:   (2,) SMEM f32                    -- 1x1-conv weight per out chan
    # b_ref:   (2,) SMEM f32                    -- conv bias per out chan
    # o_ref:   (TB, 2)  VMEM f32                -- pooled + flattened output
    # acc_ref: (TB, 1)  VMEM f32                -- running spatial sum
    k = pl.program_id(1)

    @pl.when(k == 0)
    def _():
        acc_ref[...] = jnp.zeros_like(acc_ref)

    x = x_ref[...].astype(jnp.float32)
    if needs_mask:
        # Mask garbage lanes of a partial last tile; avoids any HBM-side pad.
        col = k * hw_tile + jax.lax.broadcasted_iota(jnp.int32, x.shape, 1)
        x = jnp.where(col < hw, x, 0.0)
    acc_ref[...] += jnp.sum(x, axis=-1, keepdims=True)

    @pl.when(k == pl.num_programs(1) - 1)
    def _():
        mean_x = acc_ref[...] * inv_hw                        # (TB, 1)
        tb = acc_ref.shape[0]
        lane = jax.lax.broadcasted_iota(jnp.int32, (tb, 2), 1)
        w = jnp.where(lane == 0, w_ref[0], w_ref[1])          # (TB, 2)
        b = jnp.where(lane == 0, b_ref[0], b_ref[1])          # (TB, 2)
        o_ref[...] = (mean_x * w + b).astype(o_ref.dtype)


def _target_block_bytes():
    """Per-generation target bytes for one (double-buffered) input block."""
    try:
        kind = jax.devices()[0].device_kind.lower()
    except Exception:
        kind = ""
    if "v5" in kind:
        return 3 * 1024 * 1024
    if "v6" in kind:
        return 5 * 1024 * 1024
    if "v7" in kind:
        return 6 * 1024 * 1024
    return 4 * 1024 * 1024


def dummy_model_forward(x_nchw, weight, bias):
    """x_nchw: (N, 1, H, W); weight: (2, 1, 1, 1); bias: (2,) -> (N, 2) f32."""
    N, C, H, W = x_nchw.shape
    assert C == 1, "DummyModel's Conv2d has in_channels=1"
    hw = H * W

    # Native dtype all the way into the kernel (no wrapper f32 upcast pass).
    x = x_nchw.reshape(N, hw)
    itemsize = jnp.dtype(x.dtype).itemsize
    sub = max(8, 32 // itemsize)          # sublane packing: 8/16/32 for 4/2/1 B

    target = _target_block_bytes()
    row_bytes = hw * itemsize

    if sub * row_bytes <= target:
        # A single lane-dense block covers the whole spatial extent per row.
        hw_tile = hw
        n_hw = 1
        tb = max(sub, (target // row_bytes) // sub * sub)
        tb = min(tb, _round_up(N, sub))
        # Keep the grid >= 2 steps when possible so "parallel" can use both TCs.
        if N >= 2 * sub:
            tb = min(tb, _round_up(-(-N // 2), sub))
    else:
        # Spatial reduction axis (P3): sublane-group of batch rows per step,
        # lane tile sized to the per-generation DMA target, f32 accumulator.
        tb = sub
        hw_tile = max(128, (target // (tb * itemsize)) // 128 * 128)
        hw_tile = min(hw_tile, _round_up(hw, 128))
        n_hw = -(-hw // hw_tile)

    needs_mask = (hw % hw_tile) != 0
    n_pad = _round_up(N, tb)
    if n_pad != N:
        x = jnp.pad(x, ((0, n_pad - N), (0, 0)))   # batch-only pad (tiny)

    w2 = weight.reshape(2).astype(jnp.float32)
    b2 = bias.reshape(2).astype(jnp.float32)

    kernel = partial(conv_pool_kernel, inv_hw=1.0 / float(hw), hw=hw,
                     hw_tile=hw_tile, needs_mask=needs_mask)

    cost = pl.CostEstimate(
        flops=N * hw + 4 * N,                       # sum-reduce + tiny affine
        transcendentals=0,
        bytes_accessed=N * hw * itemsize + N * 2 * 4 + 16,
    )

    out_pad = pl.pallas_call(
        kernel,
        out_shape=jax.ShapeDtypeStruct((n_pad, 2), jnp.float32),
        grid_spec=pltpu.PrefetchScalarGridSpec(
            num_scalar_prefetch=0,
            grid=(n_pad // tb, n_hw),
            in_specs=[
                pl.BlockSpec((tb, hw_tile), lambda i, k: (i, k)),
                pl.BlockSpec(memory_space=pltpu.MemorySpace.SMEM),
                pl.BlockSpec(memory_space=pltpu.MemorySpace.SMEM),
            ],
            out_specs=pl.BlockSpec((tb, 2), lambda i, k: (i, 0)),
            scratch_shapes=[pltpu.VMEM((tb, 1), jnp.float32)],
        ),
        compiler_params=pltpu.CompilerParams(
            dimension_semantics=("parallel", "arbitrary"),
            vmem_limit_bytes=32 * 1024 * 1024,
        ),
        cost_estimate=cost,
    )(x, w2, b2)

    return out_pad[:N]


if __name__ == "__main__":
    key = jax.random.PRNGKey(0)
    kx, kw, kb = jax.random.split(key, 3)

    # Small shapes consistent with the module: batch=2, in_channels=1, 16x16.
    N, C, H, W = 2, 1, 16, 16
    x = jax.random.normal(kx, (N, C, H, W), dtype=jnp.float32)

    # Conv2d(1, 2, kernel_size=1): weight (2, 1, 1, 1), bias (2,)
    weight = jax.random.normal(kw, (2, 1, 1, 1), dtype=jnp.float32) * 0.5
    bias = jax.random.normal(kb, (2,), dtype=jnp.float32) * 0.1

    out = dummy_model_forward(x, weight, bias)
    out = jax.block_until_ready(out)

    # Pure-JAX reference: conv1x1 -> global avg pool -> flatten.
    ref = (x[:, 0].mean(axis=(1, 2))[:, None] * weight.reshape(1, 2)
           + bias.reshape(1, 2))
    assert out.shape == (N, 2)
    assert jnp.allclose(out, ref, atol=1e-5, rtol=1e-5)

    print("KERNEL_OK")
</pallas_src>

<mosaic_0001>
module attributes {stable_mosaic.version = 11 : i64} {
  func.func @conv_pool_kernel(%arg0: i32, %arg1: i32, %arg2: memref<8x256xf32, #tpu.memory_space<vmem>>, %arg3: memref<2xf32, #tpu.memory_space<smem>>, %arg4: memref<2xf32, #tpu.memory_space<smem>>, %arg5: memref<8x2xf32, #tpu.memory_space<vmem>>, %arg6: memref<8x1xf32, #tpu.memory_space<vmem>>) attributes {dimension_semantics = [#tpu.dimension_semantics<parallel>, #tpu.dimension_semantics<arbitrary>], iteration_bounds = array<i64: 1, 1>, scalar_prefetch = 0 : i64, scratch_operands = 1 : i64, tpu.core_type = #tpu.core_type<tc>, window_params = [{transform_indices = @transform_0, window_bounds = array<i64: 8, 256>}, {transform_indices = @transform_1, window_bounds = array<i64: 2>}, {transform_indices = @transform_2, window_bounds = array<i64: 2>}, {transform_indices = @transform_3, window_bounds = array<i64: 8, 2>}]} {
    %c0_i32 = arith.constant 0 : i32
    %0 = arith.cmpi eq, %arg1, %c0_i32 : i32
    %1 = arith.extui %0 : i1 to i32
    %c0_i32_0 = arith.constant 0 : i32
    %2 = arith.cmpi ne, %1, %c0_i32_0 : i32
    scf.if %2 {
      %cst_8 = arith.constant 0.000000e+00 : f32
      %12 = vector.broadcast %cst_8 : f32 to vector<8x1xf32>
      %c0_9 = arith.constant 0 : index
      %c0_10 = arith.constant 0 : index
      %13 = vector.load %arg6[%c0_9, %c0_10] : memref<8x1xf32, #tpu.memory_space<vmem>>, vector<8x1xf32>
      tpu.vector_store %arg6[%c0_9, %c0_10], %12 {strides = array<i32>} : memref<8x1xf32, #tpu.memory_space<vmem>>, vector<8x1xf32>,
    } else {
    }
    %c0 = arith.constant 0 : index
    %c0_1 = arith.constant 0 : index
    %3 = vector.load %arg2[%c0, %c0_1] : memref<8x256xf32, #tpu.memory_space<vmem>>, vector<8x256xf32>
    %c0_2 = arith.constant 0 : index
    %c0_3 = arith.constant 0 : index
    %4 = vector.load %arg6[%c0_2, %c0_3] : memref<8x1xf32, #tpu.memory_space<vmem>>, vector<8x1xf32>
    %cst = arith.constant dense<0.000000e+00> : vector<8xf32>
    %5 = vector.multi_reduction <add>, %3, %cst [1] : vector<8x256xf32> to vector<8xf32>
    %6 = vector.shape_cast %5 : vector<8xf32> to vector<8x1xf32>
    %7 = arith.addf %4, %6 : vector<8x1xf32>
    %c0_4 = arith.constant 0 : index
    %c0_5 = arith.constant 0 : index
    %8 = vector.load %arg6[%c0_4, %c0_5] : memref<8x1xf32, #tpu.memory_space<vmem>>, vector<8x1xf32>
    tpu.vector_store %arg6[%c0_4, %c0_5], %7 {strides = array<i32>} : memref<8x1xf32, #tpu.memory_space<vmem>>, vector<8x1xf32>,
    %c0_i32_6 = arith.constant 0 : i32
    %9 = arith.cmpi eq, %arg1, %c0_i32_6 : i32
    %10 = arith.extui %9 : i1 to i32
    %c0_i32_7 = arith.constant 0 : i32
    %11 = arith.cmpi ne, %10, %c0_i32_7 : i32
    scf.if %11 {
      %c0_8 = arith.constant 0 : index
      %c0_9 = arith.constant 0 : index
      %12 = vector.load %arg6[%c0_8, %c0_9] : memref<8x1xf32, #tpu.memory_space<vmem>>, vector<8x1xf32>
      %cst_10 = arith.constant 3.906250e-03 : f32
      %13 = vector.broadcast %cst_10 : f32 to vector<8x1xf32>
      %14 = arith.mulf %12, %13 : vector<8x1xf32>
      %15 = tpu.iota {dimensions = array<i32: 1>} : vector<8x2xi32>
      %c0_i32_11 = arith.constant 0 : i32
      %16 = vector.broadcast %c0_i32_11 : i32 to vector<8x2xi32>
      %17 = arith.cmpi eq, %15, %16 : vector<8x2xi32>
      %c0_12 = arith.constant 0 : index
      %18 = memref.load %arg3[%c0_12] : memref<2xf32, #tpu.memory_space<smem>>
      %c1 = arith.constant 1 : index
      %19 = memref.load %arg3[%c1] : memref<2xf32, #tpu.memory_space<smem>>
      %20 = vector.broadcast %18 : f32 to vector<8x2xf32>
      %21 = vector.broadcast %19 : f32 to vector<8x2xf32>
      %22 = arith.select %17, %20, %21 : vector<8x2xi1>, vector<8x2xf32>
      %c0_i32_13 = arith.constant 0 : i32
      %23 = vector.broadcast %c0_i32_13 : i32 to vector<8x2xi32>
      %24 = arith.cmpi eq, %15, %23 : vector<8x2xi32>
      %c0_14 = arith.constant 0 : index
      %25 = memref.load %arg4[%c0_14] : memref<2xf32, #tpu.memory_space<smem>>
      %c1_15 = arith.constant 1 : index
      %26 = memref.load %arg4[%c1_15] : memref<2xf32, #tpu.memory_space<smem>>
      %27 = vector.broadcast %25 : f32 to vector<8x2xf32>
      %28 = vector.broadcast %26 : f32 to vector<8x2xf32>
      %29 = arith.select %24, %27, %28 : vector<8x2xi1>, vector<8x2xf32>
      %30 = vector.broadcast %14 : vector<8x1xf32> to vector<8x2xf32>
      %31 = arith.mulf %30, %22 : vector<8x2xf32>
      %32 = arith.addf %31, %29 : vector<8x2xf32>
      %c0_16 = arith.constant 0 : index
      %c0_17 = arith.constant 0 : index
      %33 = vector.load %arg5[%c0_16, %c0_17] : memref<8x2xf32, #tpu.memory_space<vmem>>, vector<8x2xf32>
      tpu.vector_store %arg5[%c0_16, %c0_17], %32 {strides = array<i32>} : memref<8x2xf32, #tpu.memory_space<vmem>>, vector<8x2xf32>,
    } else {
    }
    return
  }
  func.func @transform_0(%arg0: i32, %arg1: i32) -> (i32, i32) {
    %c0_i32 = arith.constant 0 : i32
    return %arg0, %arg1 : i32, i32
  }
  func.func @transform_1(%arg0: i32, %arg1: i32) -> i32 {
    %c0_i32 = arith.constant 0 : i32
    %c0_i32_0 = arith.constant 0 : i32
    return %c0_i32 : i32
  }
  func.func @transform_2(%arg0: i32, %arg1: i32) -> i32 {
    %c0_i32 = arith.constant 0 : i32
    %c0_i32_0 = arith.constant 0 : i32
    return %c0_i32 : i32
  }
  func.func @transform_3(%arg0: i32, %arg1: i32) -> (i32, i32) {
    %c0_i32 = arith.constant 0 : i32
    %c0_i32_0 = arith.constant 0 : i32
    return %arg0, %c0_i32 : i32, i32
  }
}

</mosaic_0001>

<llo_original>
// kernel: tpu_custom_call.1
$region0: #{tpu_custom_call.1}
  #allocation0 [shape = 'u32[]', space=smem, size = 0x4, offset = 0x4, fixed_abs, tag = 'smem constant byte address 0x4 - core index']
  #allocation1 [shape = 'u32[72,128]{1,0:T(1,128)}', space=vmem, size = 0x9000, scoped, tag = 'internal scratch']
  #allocation2 [shape = 'f32[8,1]{1,0:T(8,128)}', space=vmem, size = 0x1000, scoped, tag = 'scratch operand']
  %s0 = inlined_call_operand.hbm [shape: f32[8,256], index: 0, kind: input, shape index: {}]
  %s1 = inlined_call_operand.hbm [shape: f32[2], index: 1, kind: input, shape index: {}]
  %s2 = inlined_call_operand.vmem [shape: f32[2], index: 2, kind: input, shape index: {}]
  %s3 = inlined_call_operand.vmem [shape: f32[8,2], index: 3, kind: output, shape index: {}]
  %s4 = sld [smem:[#allocation0]]
  $region42: #{tpu_custom_call.1} parent=0
    _
  %s6 = ssub.s32 1, %s4
  %s7 = scalar_select 0, %s6, %s4
  $region1: #{tpu_custom_call.1} parent=0
    #allocation3 [shape = 'u8[8192]{0}', space=vmem, size = 0x2000, scoped, tag = 'input window, operand 0, single buffered']
    #allocation4 [shape = 's32[1]{0}', space=sflag, size = 0x4, scoped, tag = 'scoped memory for tpu_custom_call.1']
    #allocation5 [shape = 's32[1]{0}', space=sflag, size = 0x4, scoped, tag = 'scoped memory for tpu_custom_call.1']
    #allocation6 [shape = 's32[1]{0}', space=sflag, size = 0x4, scoped, tag = 'scoped memory for tpu_custom_call.1']
    #allocation7 [shape = 'u8[512]{0}', space=smem, size = 0x200, scoped, tag = 'input window, operand 1, single buffered']
    #allocation8 [shape = 'u8[512]{0}', space=smem, size = 0x200, scoped, tag = 'input window, operand 2, single buffered']
    %8 = vsyncpa [#allocation4], 0
    %9 = vsyncpa [#allocation5], 0
    %10 = vsyncpa [#allocation6], 0
    // Predicated region
    $region2: #{tpu_custom_call.1} parent=1 // pred_check
      _
    $region3: #{tpu_custom_call.1} parent=1 // pred_check_branch
      %12 = sbr.rel (0) target = $region5
    $region4: #{tpu_custom_call.1} parent=1 // pred_region
      %14 = vsyncadd [#allocation4], 0
      %s16 = sshll.u32 %s0, 4
      %s17 = int_to_ptr.hbm [resolvable:$true] %s16
      %s18 = sshll.u32 [#allocation3], 4
      %s19 = int_to_ptr.vmem [resolvable:$true] %s18
      %21 = dma.hbm_to_vmem [thread:$0]  %s17, 256, %s19, [#allocation4]
    $region5: #{tpu_custom_call.1} parent=1 // pred_fallthru
      _
    // Predicated region
    $region6: #{tpu_custom_call.1} parent=1 // pred_check
      _
    $region7: #{tpu_custom_call.1} parent=1 // pred_check_branch
      %23 = sbr.rel (0) target = $region9
    $region8: #{tpu_custom_call.1} parent=1 // pred_region
      %25 = vsyncadd [#allocation5], 0
      %s27 = sshll.u32 %s1, 4
      %s28 = int_to_ptr.hbm [resolvable:$true] %s27
      %30 = dma.hbm_to_smem %s28, 16, [#allocation7], [#allocation5]
    $region9: #{tpu_custom_call.1} parent=1 // pred_fallthru
      _
    // Predicated region
    $region10: #{tpu_custom_call.1} parent=1 // pred_check
      _
    $region11: #{tpu_custom_call.1} parent=1 // pred_check_branch
      %32 = sbr.rel (0) target = $region13
    $region12: #{tpu_custom_call.1} parent=1 // pred_region
      %34 = vsyncadd [#allocation6], 0
      %s36 = sshll.u32 %s2, 4
      %s37 = int_to_ptr.vmem [resolvable:$true] %s36
      %39 = dma.vmem_to_smem %s37, 16, [#allocation8], [#allocation6]
    $region13: #{tpu_custom_call.1} parent=1 // pred_fallthru
      _
    // Predicated region
    $region14: #{tpu_custom_call.1} parent=1 // pred_check
      _
    $region15: #{tpu_custom_call.1} parent=1 // pred_check_branch
      %41 = sbr.rel (0) target = $region17
    $region16: #{tpu_custom_call.1} parent=1 // pred_region
      %43 = dma.done [#allocation4], 256
    $region17: #{tpu_custom_call.1} parent=1 // pred_fallthru
      _
    // Predicated region
    $region18: #{tpu_custom_call.1} parent=1 // pred_check
      _
    $region19: #{tpu_custom_call.1} parent=1 // pred_check_branch
      %45 = sbr.rel (0) target = $region21
    $region20: #{tpu_custom_call.1} parent=1 // pred_region
      %47 = dma.done [#allocation5], 16
    $region21: #{tpu_custom_call.1} parent=1 // pred_fallthru
      _
    // Predicated region
    $region22: #{tpu_custom_call.1} parent=1 // pred_check
      _
    $region23: #{tpu_custom_call.1} parent=1 // pred_check_branch
      %49 = sbr.rel (0) target = $region25
    $region24: #{tpu_custom_call.1} parent=1 // pred_region
      %51 = dma.done [#allocation6], 16
    $region25: #{tpu_custom_call.1} parent=1 // pred_fallthru
      _
    %52 = sfence
    %p53 = scmp.eq.s32.totalorder 0, 0
    // Predicated region
    $region26: #{tpu_custom_call.1} parent=1 // pred_check
      %p54 = pneg %p53
    $region27: #{tpu_custom_call.1} parent=1 // pred_check_branch
      %56 = sbr.rel (%p54) target = $region29
    $region28: #{tpu_custom_call.1} parent=1 // pred_region
      %vm57 = vcmask 7168
      %58 = vst.msk [vmem:[#allocation2] sm:$0xff] %vm57, 0.0
    $region29: #{tpu_custom_call.1} parent=1 // pred_fallthru
      _
    %v59 = vld [vmem:[#allocation3] sm:$0xff]
    %v60 = vld [vmem:[#allocation3 + $0x8] sm:$0xff]
    %v61 = vld [vmem:[#allocation2] sm:$0xff]
    %v62 = vadd.f32 %v59, %v60
    %63 = vadd.xlane.f32.xlu0 %v62
    %v64 = vpop.xlane.xlu0 %63
    %v65 = vadd.f32 %v61, %v64
    %vm66 = vcmask 7168
    %67 = vst.msk [vmem:[#allocation2] sm:$0xff] %vm66, %v65
    // Predicated region
    $region30: #{tpu_custom_call.1} parent=1 // pred_check
      %p68 = pneg %p53
    $region31: #{tpu_custom_call.1} parent=1 // pred_check_branch
      %70 = sbr.rel (%p68) target = $region33
    $region32: #{tpu_custom_call.1} parent=1 // pred_region
      %v71 = vld [vmem:[#allocation2] sm:$0xff]
      %v72 = vmul.f32 %v71, 0.00390625
      %v73 = vlaneseq
      %v74 = vand.u32 %v73, 127
      %vm75 = vcmp.eq.s32.totalorder %v74, 0
      %s76 = sld [smem:[#allocation7]]
      %s77 = sld [smem:[#allocation7 + $0x1]]
      %v78 = vstv %s76
      %v79 = vstv %s77
      %v80 = vsel %vm75, %v78, %v79
      %s81 = sld [smem:[#allocation8]]
      %s82 = sld [smem:[#allocation8 + $0x1]]
      %v83 = vstv %s81
      %v84 = vstv %s82
      %v85 = vsel %vm75, %v83, %v84
      %87 = vset.pattern.permute.xlu0 0
      %88 = vperm.xlu0 %87, %v72
      %v89 = vpop.permute.xlu0 %88
      %v91 = vmul.f32 %v89, %v80
      %v92 = vadd.f32 %v91, %v85
      %vm93 = vcmask 15360
      %94 = vst.msk [vmem:[%s3] sm:$0xff] %vm93, %v92
    $region33: #{tpu_custom_call.1} parent=1 // pred_fallthru
      _
    // Predicated region
    $region34: #{tpu_custom_call.1} parent=1 // pred_check
      _
    $region35: #{tpu_custom_call.1} parent=1 // pred_check_branch
      %96 = sbr.rel (0) target = $region37
    $region36: #{tpu_custom_call.1} parent=1 // pred_region
      _
    $region37: #{tpu_custom_call.1} parent=1 // pred_fallthru
      _
    // Predicated region
    $region38: #{tpu_custom_call.1} parent=1 // pred_check
      _
    $region39: #{tpu_custom_call.1} parent=1 // pred_check_branch
      %98 = sbr.rel (0) target = $region41
    $region40: #{tpu_custom_call.1} parent=1 // pred_region
      _
    $region41: #{tpu_custom_call.1} parent=1 // pred_fallthru
      _
    %99 = vsyncpa [#allocation4], 1
    %100 = vsyncpa [#allocation5], 1
    %101 = vsyncpa [#allocation6], 1

</llo_original>
